<compile_context>
chip_gen: v7x
topology: tpu7x:2x2x1
jax: 0.10.0
libtpu: 0.0.40
codegen_flags: <defaults>
</compile_context>

<pallas_src>
import functools
import math

import jax
import jax.numpy as jnp
from jax.experimental import pallas as pl
from jax.experimental.pallas import tpu as pltpu

LOG_SIG_MIN = -20.0
LOG_SIG_MAX = 2.0

# Per-step row cap: 1024 amortizes step overhead on v6e/v7x while keeping the
# double-buffered per-step footprint (~5-6 MiB incl. f32 h1/h2 intermediates)
# comfortably inside v5e's smaller scoped-VMEM budget.
TB_CAP = 1024


def _round_up(x, m):
    return ((x + m - 1) // m) * m


def _policy_kernel(x_ref, w1_ref, b1_ref, w2_ref, b2_ref, wh_ref, bh_ref,
                   lo_ref, hi_ref, out_ref):
    # Layer 1: h1 = relu(x @ W1 + b1)   (bf16 operands, f32 accumulation)
    h1 = jnp.dot(x_ref[...], w1_ref[...],
                 preferred_element_type=jnp.float32) + b1_ref[...]
    h1 = jnp.maximum(h1, 0.0)

    # Layer 2: h2 = relu(h1 @ W2 + b2)
    h2 = jnp.dot(h1.astype(w2_ref.dtype), w2_ref[...],
                 preferred_element_type=jnp.float32) + b2_ref[...]
    h2 = jnp.maximum(h2, 0.0)

    # Fused heads: single (TB, H) x (H, HOUT) matmul, lane-dense output
    # (mean in cols [0,A), log_std in [A,2A), zero padding beyond).
    y = jnp.dot(h2.astype(wh_ref.dtype), wh_ref[...],
                preferred_element_type=jnp.float32) + bh_ref[...]

    # Clamp via broadcast max/min against precomputed per-lane bounds:
    # mean lanes have (-inf, +inf), log_std lanes have (-20, 2).
    y = jnp.minimum(jnp.maximum(y, lo_ref[...]), hi_ref[...])

    out_ref[...] = y.astype(out_ref.dtype)


@functools.partial(jax.jit, static_argnames=("action_dim",))
def policy_forward(state, skill, params, *, action_dim):
    """Equivalent of Policy.forward(state, skill) -> (mean, log_std)."""
    B = state.shape[0]
    in_dim = state.shape[-1] + skill.shape[-1]
    hidden = params["w1"].shape[1]
    hout = params["wh"].shape[1]  # padded fused-head width (>= 2*action_dim)

    # --- balanced batch tiling -------------------------------------------
    n = pl.cdiv(B, TB_CAP)
    if B > 512:
        n = max(2, n)
        n += n % 2            # even grid so v7x's two TensorCores split evenly
    tb = _round_up(pl.cdiv(B, n), 8)
    b_pad = n * tb

    # Concat on device (trivially cheap) and cast activations to bf16.
    x = jnp.concatenate([state, skill], axis=-1).astype(jnp.bfloat16)
    if b_pad != B:
        x = jnp.pad(x, ((0, b_pad - B), (0, 0)))

    # Per-lane clamp bounds (constant-folded under jit).
    col = jnp.arange(hout)
    is_ls = (col >= action_dim) & (col < 2 * action_dim)
    clip_lo = jnp.where(is_ls, jnp.float32(LOG_SIG_MIN),
                        jnp.float32(-jnp.inf))[None, :]
    clip_hi = jnp.where(is_ls, jnp.float32(LOG_SIG_MAX),
                        jnp.float32(jnp.inf))[None, :]

    row = lambda i: (i, 0)
    const = lambda i: (0, 0)

    weight_bytes = sum(int(params[k].size) * params[k].dtype.itemsize
                       for k in ("w1", "b1", "w2", "b2", "wh", "bh"))
    flops = 2 * b_pad * (in_dim * hidden + hidden * hidden + hidden * hout)
    bytes_accessed = (int(x.size) * 2 + weight_bytes
                      + int(clip_lo.size) * 4 * 2
                      + b_pad * hout * 2)

    out = pl.pallas_call(
        _policy_kernel,
        out_shape=jax.ShapeDtypeStruct((b_pad, hout), jnp.bfloat16),
        grid=(b_pad // tb,),
        in_specs=[
            pl.BlockSpec((tb, in_dim), row),
            pl.BlockSpec(params["w1"].shape, const),
            pl.BlockSpec(params["b1"].shape, const),
            pl.BlockSpec(params["w2"].shape, const),
            pl.BlockSpec(params["b2"].shape, const),
            pl.BlockSpec(params["wh"].shape, const),
            pl.BlockSpec(params["bh"].shape, const),
            pl.BlockSpec(clip_lo.shape, const),
            pl.BlockSpec(clip_hi.shape, const),
        ],
        out_specs=pl.BlockSpec((tb, hout), row),
        compiler_params=pltpu.CompilerParams(
            dimension_semantics=("parallel",),
            vmem_limit_bytes=32 << 20),
        cost_estimate=pl.CostEstimate(
            flops=flops, transcendentals=0, bytes_accessed=bytes_accessed),
    )(x, params["w1"], params["b1"], params["w2"], params["b2"],
      params["wh"], params["bh"], clip_lo, clip_hi)

    mean = out[:B, :action_dim].astype(jnp.float32)
    log_std = out[:B, action_dim:2 * action_dim].astype(jnp.float32)
    return mean, log_std


def _xavier_uniform(key, fan_in, fan_out):
    # matches torch.nn.init.xavier_uniform_ (gain=1); stored as (in, out)
    bound = math.sqrt(6.0 / (fan_in + fan_out))
    return jax.random.uniform(key, (fan_in, fan_out), jnp.float32,
                              minval=-bound, maxval=bound)


def _default_bias(key, fan_in, out):
    b = 1.0 / math.sqrt(fan_in)
    return jax.random.uniform(key, (1, out), jnp.float32, minval=-b, maxval=b)


def init_policy_params(key, state_dim, skill_dim, action_dim, hidden_dim=256):
    """Weights stored transposed (in, out) in bf16; biases (1, out) in f32.

    The two output heads (mean, log_std) are fused and zero-padded along the
    lane dim to >=128 so the kernel writes one lane-dense output tile.
    """
    in_dim = state_dim + skill_dim
    ks = jax.random.split(key, 8)

    w1 = _xavier_uniform(ks[0], in_dim, hidden_dim)
    b1 = _default_bias(ks[1], in_dim, hidden_dim)
    w2 = _xavier_uniform(ks[2], hidden_dim, hidden_dim)
    b2 = _default_bias(ks[3], hidden_dim, hidden_dim)
    wm = _xavier_uniform(ks[4], hidden_dim, action_dim)
    bm = _default_bias(ks[5], hidden_dim, action_dim)
    ws = _xavier_uniform(ks[6], hidden_dim, action_dim)
    bs = _default_bias(ks[7], hidden_dim, action_dim)

    hout = max(_round_up(2 * action_dim, 128), 128)
    wh = jnp.zeros((hidden_dim, hout), jnp.float32)
    wh = wh.at[:, :action_dim].set(wm).at[:, action_dim:2 * action_dim].set(ws)
    bh = jnp.zeros((1, hout), jnp.float32)
    bh = bh.at[:, :action_dim].set(bm).at[:, action_dim:2 * action_dim].set(bs)

    bf16 = jnp.bfloat16
    return {
        "w1": w1.astype(bf16),
        "b1": b1,
        "w2": w2.astype(bf16),
        "b2": b2,
        "wh": wh.astype(bf16),
        "bh": bh,
    }


def _reference_forward(state, skill, params, action_dim):
    """Pure-JAX reference mirroring the kernel's bf16-operand / f32-accum math
    (including the bf16 output rounding)."""
    f32 = lambda a: a.astype(jnp.float32)
    bf = lambda a: a.astype(jnp.bfloat16).astype(jnp.float32)
    x = bf(jnp.concatenate([state, skill], axis=-1))
    h1 = jnp.maximum(x @ f32(params["w1"]) + params["b1"], 0.0)
    h2 = jnp.maximum(bf(h1) @ f32(params["w2"]) + params["b2"], 0.0)
    y = bf(h2) @ f32(params["wh"]) + params["bh"]
    ls = jnp.clip(y[:, action_dim:2 * action_dim], LOG_SIG_MIN, LOG_SIG_MAX)
    mean = bf(y[:, :action_dim])
    log_std = bf(ls)
    return mean, log_std


if __name__ == "__main__":
    # small, forward-consistent shapes
    batch = 8
    state_dim = 12
    skill_dim = 4
    action_dim = 8
    hidden_dim = 32

    key = jax.random.PRNGKey(0)
    k_state, k_skill, k_params = jax.random.split(key, 3)

    state = jax.random.normal(k_state, (batch, state_dim), dtype=jnp.float32)
    skill = jax.random.normal(k_skill, (batch, skill_dim), dtype=jnp.float32)
    params = init_policy_params(k_params, state_dim, skill_dim, action_dim,
                                hidden_dim)

    mean, log_std = policy_forward(state, skill, params, action_dim=action_dim)
    jax.block_until_ready((mean, log_std))

    ref_mean, ref_log_std = _reference_forward(state, skill, params, action_dim)
    assert mean.shape == (batch, action_dim)
    assert log_std.shape == (batch, action_dim)
    assert jnp.allclose(mean, ref_mean, atol=2e-2, rtol=2e-2), \
        float(jnp.max(jnp.abs(mean - ref_mean)))
    assert jnp.allclose(log_std, ref_log_std, atol=2e-2, rtol=2e-2), \
        float(jnp.max(jnp.abs(log_std - ref_log_std)))
    assert bool(jnp.all(log_std <= LOG_SIG_MAX))
    assert bool(jnp.all(log_std >= LOG_SIG_MIN))

    print("KERNEL_OK")
</pallas_src>

<mosaic_0001>
module attributes {stable_mosaic.version = 11 : i64} {
  func.func @_policy_kernel(%arg0: i32, %arg1: memref<8x16xbf16, #tpu.memory_space<vmem>>, %arg2: memref<16x32xbf16, #tpu.memory_space<vmem>>, %arg3: memref<1x32xf32, #tpu.memory_space<vmem>>, %arg4: memref<32x32xbf16, #tpu.memory_space<vmem>>, %arg5: memref<1x32xf32, #tpu.memory_space<vmem>>, %arg6: memref<32x128xbf16, #tpu.memory_space<vmem>>, %arg7: memref<1x128xf32, #tpu.memory_space<vmem>>, %arg8: memref<1x128xf32, #tpu.memory_space<vmem>>, %arg9: memref<1x128xf32, #tpu.memory_space<vmem>>, %arg10: memref<8x128xbf16, #tpu.memory_space<vmem>>) attributes {dimension_semantics = [#tpu.dimension_semantics<parallel>], iteration_bounds = array<i64: 1>, scalar_prefetch = 0 : i64, scratch_operands = 0 : i64, tpu.core_type = #tpu.core_type<tc>, window_params = [{transform_indices = @transform_0, window_bounds = array<i64: 8, 16>}, {pipeline_mode = #tpu.pipeline_mode<synchronous>, transform_indices = @transform_1, window_bounds = array<i64: 16, 32>}, {pipeline_mode = #tpu.pipeline_mode<synchronous>, transform_indices = @transform_2, window_bounds = array<i64: 1, 32>}, {pipeline_mode = #tpu.pipeline_mode<synchronous>, transform_indices = @transform_3, window_bounds = array<i64: 32, 32>}, {pipeline_mode = #tpu.pipeline_mode<synchronous>, transform_indices = @transform_4, window_bounds = array<i64: 1, 32>}, {pipeline_mode = #tpu.pipeline_mode<synchronous>, transform_indices = @transform_5, window_bounds = array<i64: 32, 128>}, {pipeline_mode = #tpu.pipeline_mode<synchronous>, transform_indices = @transform_6, window_bounds = array<i64: 1, 128>}, {pipeline_mode = #tpu.pipeline_mode<synchronous>, transform_indices = @transform_7, window_bounds = array<i64: 1, 128>}, {pipeline_mode = #tpu.pipeline_mode<synchronous>, transform_indices = @transform_8, window_bounds = array<i64: 1, 128>}, {transform_indices = @transform_9, window_bounds = array<i64: 8, 128>}]} {
    %c0 = arith.constant 0 : index
    %c0_0 = arith.constant 0 : index
    %0 = vector.load %arg1[%c0, %c0_0] : memref<8x16xbf16, #tpu.memory_space<vmem>>, vector<8x16xbf16>
    %c0_1 = arith.constant 0 : index
    %c0_2 = arith.constant 0 : index
    %1 = vector.load %arg2[%c0_1, %c0_2] : memref<16x32xbf16, #tpu.memory_space<vmem>>, vector<16x32xbf16>
    %cst = arith.constant dense<0.000000e+00> : vector<8x32xf32>
    %2 = tpu.matmul %0, %1, %cst {dimension_numbers = #tpu.dot_dimension_numbers<[1], [0], [0], [1], [0, 0, 1, 1], [], []>} : vector<8x16xbf16>, vector<16x32xbf16>, vector<8x32xf32> -> vector<8x32xf32>
    %c0_3 = arith.constant 0 : index
    %c0_4 = arith.constant 0 : index
    %3 = vector.load %arg3[%c0_3, %c0_4] : memref<1x32xf32, #tpu.memory_space<vmem>>, vector<1x32xf32>
    %4 = vector.broadcast %3 : vector<1x32xf32> to vector<8x32xf32>
    %5 = arith.addf %2, %4 : vector<8x32xf32>
    %cst_5 = arith.constant 0.000000e+00 : f32
    %6 = vector.broadcast %cst_5 : f32 to vector<8x32xf32>
    %7 = arith.maximumf %5, %6 : vector<8x32xf32>
    %8 = arith.truncf %7 : vector<8x32xf32> to vector<8x32xbf16>
    %c0_6 = arith.constant 0 : index
    %c0_7 = arith.constant 0 : index
    %9 = vector.load %arg4[%c0_6, %c0_7] : memref<32x32xbf16, #tpu.memory_space<vmem>>, vector<32x32xbf16>
    %cst_8 = arith.constant dense<0.000000e+00> : vector<8x32xf32>
    %10 = tpu.matmul %8, %9, %cst_8 {dimension_numbers = #tpu.dot_dimension_numbers<[1], [0], [0], [1], [0, 0, 1, 1], [], []>} : vector<8x32xbf16>, vector<32x32xbf16>, vector<8x32xf32> -> vector<8x32xf32>
    %c0_9 = arith.constant 0 : index
    %c0_10 = arith.constant 0 : index
    %11 = vector.load %arg5[%c0_9, %c0_10] : memref<1x32xf32, #tpu.memory_space<vmem>>, vector<1x32xf32>
    %12 = vector.broadcast %11 : vector<1x32xf32> to vector<8x32xf32>
    %13 = arith.addf %10, %12 : vector<8x32xf32>
    %cst_11 = arith.constant 0.000000e+00 : f32
    %14 = vector.broadcast %cst_11 : f32 to vector<8x32xf32>
    %15 = arith.maximumf %13, %14 : vector<8x32xf32>
    %16 = arith.truncf %15 : vector<8x32xf32> to vector<8x32xbf16>
    %c0_12 = arith.constant 0 : index
    %c0_13 = arith.constant 0 : index
    %17 = vector.load %arg6[%c0_12, %c0_13] : memref<32x128xbf16, #tpu.memory_space<vmem>>, vector<32x128xbf16>
    %cst_14 = arith.constant dense<0.000000e+00> : vector<8x128xf32>
    %18 = tpu.matmul %16, %17, %cst_14 {dimension_numbers = #tpu.dot_dimension_numbers<[1], [0], [0], [1], [0, 0, 1, 1], [], []>} : vector<8x32xbf16>, vector<32x128xbf16>, vector<8x128xf32> -> vector<8x128xf32>
    %c0_15 = arith.constant 0 : index
    %c0_16 = arith.constant 0 : index
    %19 = vector.load %arg7[%c0_15, %c0_16] : memref<1x128xf32, #tpu.memory_space<vmem>>, vector<1x128xf32>
    %20 = vector.broadcast %19 : vector<1x128xf32> to vector<8x128xf32>
    %21 = arith.addf %18, %20 : vector<8x128xf32>
    %c0_17 = arith.constant 0 : index
    %c0_18 = arith.constant 0 : index
    %22 = vector.load %arg8[%c0_17, %c0_18] : memref<1x128xf32, #tpu.memory_space<vmem>>, vector<1x128xf32>
    %23 = vector.broadcast %22 : vector<1x128xf32> to vector<8x128xf32>
    %24 = arith.maximumf %21, %23 : vector<8x128xf32>
    %c0_19 = arith.constant 0 : index
    %c0_20 = arith.constant 0 : index
    %25 = vector.load %arg9[%c0_19, %c0_20] : memref<1x128xf32, #tpu.memory_space<vmem>>, vector<1x128xf32>
    %26 = vector.broadcast %25 : vector<1x128xf32> to vector<8x128xf32>
    %27 = arith.minimumf %24, %26 : vector<8x128xf32>
    %28 = arith.truncf %27 : vector<8x128xf32> to vector<8x128xbf16>
    %c0_21 = arith.constant 0 : index
    %c0_22 = arith.constant 0 : index
    %29 = vector.load %arg10[%c0_21, %c0_22] : memref<8x128xbf16, #tpu.memory_space<vmem>>, vector<8x128xbf16>
    tpu.vector_store %arg10[%c0_21, %c0_22], %28 {strides = array<i32>} : memref<8x128xbf16, #tpu.memory_space<vmem>>, vector<8x128xbf16>,
    return
  }
  func.func @transform_0(%arg0: i32) -> (i32, i32) {
    %c0_i32 = arith.constant 0 : i32
    %c0_i32_0 = arith.constant 0 : i32
    return %arg0, %c0_i32 : i32, i32
  }
  func.func @transform_1(%arg0: i32) -> (i32, i32) {
    %c0_i32 = arith.constant 0 : i32
    %c0_i32_0 = arith.constant 0 : i32
    %c0_i32_1 = arith.constant 0 : i32
    return %c0_i32, %c0_i32_0 : i32, i32
  }
  func.func @transform_2(%arg0: i32) -> (i32, i32) {
    %c0_i32 = arith.constant 0 : i32
    %c0_i32_0 = arith.constant 0 : i32
    %c0_i32_1 = arith.constant 0 : i32
    return %c0_i32, %c0_i32_0 : i32, i32
  }
  func.func @transform_3(%arg0: i32) -> (i32, i32) {
    %c0_i32 = arith.constant 0 : i32
    %c0_i32_0 = arith.constant 0 : i32
    %c0_i32_1 = arith.constant 0 : i32
    return %c0_i32, %c0_i32_0 : i32, i32
  }
  func.func @transform_4(%arg0: i32) -> (i32, i32) {
    %c0_i32 = arith.constant 0 : i32
    %c0_i32_0 = arith.constant 0 : i32
    %c0_i32_1 = arith.constant 0 : i32
    return %c0_i32, %c0_i32_0 : i32, i32
  }
  func.func @transform_5(%arg0: i32) -> (i32, i32) {
    %c0_i32 = arith.constant 0 : i32
    %c0_i32_0 = arith.constant 0 : i32
    %c0_i32_1 = arith.constant 0 : i32
    return %c0_i32, %c0_i32_0 : i32, i32
  }
  func.func @transform_6(%arg0: i32) -> (i32, i32) {
    %c0_i32 = arith.constant 0 : i32
    %c0_i32_0 = arith.constant 0 : i32
    %c0_i32_1 = arith.constant 0 : i32
    return %c0_i32, %c0_i32_0 : i32, i32
  }
  func.func @transform_7(%arg0: i32) -> (i32, i32) {
    %c0_i32 = arith.constant 0 : i32
    %c0_i32_0 = arith.constant 0 : i32
    %c0_i32_1 = arith.constant 0 : i32
    return %c0_i32, %c0_i32_0 : i32, i32
  }
  func.func @transform_8(%arg0: i32) -> (i32, i32) {
    %c0_i32 = arith.constant 0 : i32
    %c0_i32_0 = arith.constant 0 : i32
    %c0_i32_1 = arith.constant 0 : i32
    return %c0_i32, %c0_i32_0 : i32, i32
  }
  func.func @transform_9(%arg0: i32) -> (i32, i32) {
    %c0_i32 = arith.constant 0 : i32
    %c0_i32_0 = arith.constant 0 : i32
    return %arg0, %c0_i32 : i32, i32
  }
}

</mosaic_0001>

<llo_original>
// kernel: policy_forward.1
$region0: #{policy_forward.1}
  #allocation0 [shape = 'u32[]', space=smem, size = 0x4, offset = 0x4, fixed_abs, tag = 'smem constant byte address 0x4 - core index']
  #allocation1 [shape = 'u32[144,128]{1,0:T(1,128)}', space=vmem, size = 0x12000, scoped, tag = 'internal scratch']
  %s0 = inlined_call_operand.vmem [shape: bf16[8,16], index: 0, kind: input, shape index: {}]
  %s1 = inlined_call_operand.vmem [shape: bf16[16,32], index: 1, kind: input, shape index: {}]
  %s2 = inlined_call_operand.vmem [shape: f32[1,32], index: 2, kind: input, shape index: {}]
  %s3 = inlined_call_operand.vmem [shape: bf16[32,32], index: 3, kind: input, shape index: {}]
  %s4 = inlined_call_operand.vmem [shape: f32[1,32], index: 4, kind: input, shape index: {}]
  %s5 = inlined_call_operand.vmem [shape: bf16[32,128], index: 5, kind: input, shape index: {}]
  %s6 = inlined_call_operand.vmem [shape: f32[1,128], index: 6, kind: input, shape index: {}]
  %s7 = inlined_call_operand.vmem [shape: f32[1,128], index: 7, kind: input, shape index: {}]
  %s8 = inlined_call_operand.vmem [shape: f32[1,128], index: 8, kind: input, shape index: {}]
  %s9 = inlined_call_operand.vmem [shape: bf16[8,128], index: 9, kind: output, shape index: {}]
  %s10 = sld [smem:[#allocation0]]
  $region46: #{policy_forward.1} parent=0
    _
  %s12 = ssub.s32 1, %s10
  %s13 = scalar_select 0, %s12, %s10
  // Predicated region
  $region2: #{policy_forward.1} parent=0 // pred_check
    _
  $region3: #{policy_forward.1} parent=0 // pred_check_branch
    %15 = sbr.rel (0) target = $region5
  $region4: #{policy_forward.1} parent=0 // pred_region
    _
  $region5: #{policy_forward.1} parent=0 // pred_fallthru
    _
  // Predicated region
  $region6: #{policy_forward.1} parent=0 // pred_check
    _
  $region7: #{policy_forward.1} parent=0 // pred_check_branch
    %17 = sbr.rel (0) target = $region9
  $region8: #{policy_forward.1} parent=0 // pred_region
    _
  $region9: #{policy_forward.1} parent=0 // pred_fallthru
    _
  // Predicated region
  $region10: #{policy_forward.1} parent=0 // pred_check
    _
  $region11: #{policy_forward.1} parent=0 // pred_check_branch
    %19 = sbr.rel (0) target = $region13
  $region12: #{policy_forward.1} parent=0 // pred_region
    _
  $region13: #{policy_forward.1} parent=0 // pred_fallthru
    _
  // Predicated region
  $region14: #{policy_forward.1} parent=0 // pred_check
    _
  $region15: #{policy_forward.1} parent=0 // pred_check_branch
    %21 = sbr.rel (0) target = $region17
  $region16: #{policy_forward.1} parent=0 // pred_region
    _
  $region17: #{policy_forward.1} parent=0 // pred_fallthru
    _
  // Predicated region
  $region18: #{policy_forward.1} parent=0 // pred_check
    _
  $region19: #{policy_forward.1} parent=0 // pred_check_branch
    %23 = sbr.rel (0) target = $region21
  $region20: #{policy_forward.1} parent=0 // pred_region
    _
  $region21: #{policy_forward.1} parent=0 // pred_fallthru
    _
  // Predicated region
  $region22: #{policy_forward.1} parent=0 // pred_check
    _
  $region23: #{policy_forward.1} parent=0 // pred_check_branch
    %25 = sbr.rel (0) target = $region25
  $region24: #{policy_forward.1} parent=0 // pred_region
    _
  $region25: #{policy_forward.1} parent=0 // pred_fallthru
    _
  // Predicated region
  $region26: #{policy_forward.1} parent=0 // pred_check
    _
  $region27: #{policy_forward.1} parent=0 // pred_check_branch
    %27 = sbr.rel (0) target = $region29
  $region28: #{policy_forward.1} parent=0 // pred_region
    _
  $region29: #{policy_forward.1} parent=0 // pred_fallthru
    _
  // Predicated region
  $region30: #{policy_forward.1} parent=0 // pred_check
    _
  $region31: #{policy_forward.1} parent=0 // pred_check_branch
    %29 = sbr.rel (0) target = $region33
  $region32: #{policy_forward.1} parent=0 // pred_region
    _
  $region33: #{policy_forward.1} parent=0 // pred_fallthru
    _
  // Predicated region
  $region34: #{policy_forward.1} parent=0 // pred_check
    _
  $region35: #{policy_forward.1} parent=0 // pred_check_branch
    %31 = sbr.rel (0) target = $region37
  $region36: #{policy_forward.1} parent=0 // pred_region
    _
  $region37: #{policy_forward.1} parent=0 // pred_fallthru
    _
  %v33 = vld [vmem:[%s0] sm:$0xf]
  %v34 = vld [vmem:[%s1] sm:$0xf]
  %v35 = vld [vmem:[%s1 + $0x4] sm:$0xf]
  %v36 = vld [vmem:[%s2] sm:$0x1]
  %v38 = vlaneseq
  %v39 = vshrl.u32 %v38, 7
  %v40 = vsub.s32 0, %v39
  %v41 = vrot.slane %v36, %v40
  %v45 = vunpack.c.l.b16 %v34
  %v46 = vunpack.c.l.b16 %v35
  %v47 = vpack.c.b16 %v46, %v45
  %vm49 = vcmask 130048
  %v51 = vsel %vm49, %v33, 0
  %53 = vmatprep.subr.bf16.mxu0 0
  %54 = vmatpush1.bf16.msra.mxu0 %v47
  %55 = vmatprep.subr.bf16.mxu0 0
  %56 = vmatpush1.bf16.msra.mxu0 0
  %57 = vmatprep.subr.bf16.mxu0 0
  %58 = vmatpush1.bf16.msra.mxu0 0
  %59 = vmatprep.subr.bf16.mxu0 0
  %60 = vmatpush1.bf16.msra.mxu0 0
  %61 = vmatprep.subr.bf16.mxu0 0
  %62 = vmatpush1.bf16.msra.mxu0 0
  %63 = vmatprep.subr.bf16.mxu0 0
  %64 = vmatpush1.bf16.msra.mxu0 0
  %65 = vmatprep.subr.bf16.mxu0 0
  %66 = vmatpush1.bf16.msra.mxu0 0
  %67 = vmatprep.subr.bf16.mxu0 0
  %68 = vmatpush1.bf16.msra.mxu0 0
  %69 = vmatprep.subr.bf16.mxu0 0
  %70 = vmatpush1.bf16.msra.mxu0 0
  %71 = vmatprep.subr.bf16.mxu0 0
  %72 = vmatpush1.bf16.msra.mxu0 0
  %73 = vmatprep.subr.bf16.mxu0 0
  %74 = vmatpush1.bf16.msra.mxu0 0
  %75 = vmatprep.subr.bf16.mxu0 0
  %76 = vmatpush1.bf16.msra.mxu0 0
  %77 = vmatprep.subr.bf16.mxu0 0
  %78 = vmatpush1.bf16.msra.mxu0 0
  %79 = vmatprep.subr.bf16.mxu0 0
  %80 = vmatpush1.bf16.msra.mxu0 0
  %81 = vmatprep.subr.bf16.mxu0 0
  %82 = vmatpush1.bf16.msra.mxu0 0
  %83 = vmatprep.subr.bf16.mxu0 0
  %84 = vmatpush1.bf16.msra.mxu0 0
  %85 = vmatprep.mubr.bf16.mxu0 0
  %86 = vmatmul.mubr.bf16.gmra.mrb[0].mxu0 %v51
  %v87 = vpop.f32.mrb[0].mxu0
  %v88 = vadd.f32 %v41, %v87
  %v89 = vpop.f32.mrb[0].mxu0
  %v90 = vpop.f32.mrb[0].mxu0
  %v91 = vpop.f32.mrb[0].mxu0
  %92 = vdwg.mxu0
  %v93 = vmax.f32 %v88, 0.0
  %v94 = vpack.c.bf16 %v93, %v93
  %v95 = vld [vmem:[%s3] sm:$0xf]
  %v96 = vld [vmem:[%s3 + $0x4] sm:$0xf]
  %v97 = vld [vmem:[%s3 + $0x8] sm:$0xf]
  %v98 = vld [vmem:[%s3 + $0xc] sm:$0xf]
  %v99 = vld [vmem:[%s4] sm:$0x1]
  %v101 = vlaneseq
  %v102 = vshrl.u32 %v101, 7
  %v103 = vsub.s32 0, %v102
  %v104 = vrot.slane %v99, %v103
  %v110 = vunpack.c.l.b16 %v95
  %v111 = vunpack.c.l.b16 %v96
  %v112 = vunpack.c.l.b16 %v97
  %v113 = vunpack.c.l.b16 %v98
  %v114 = vpack.c.b16 %v111, %v110
  %v115 = vpack.c.b16 %v113, %v112
  %vm118 = vcmask 261120
  %v120 = vsel %vm118, %v94, 0
  %122 = vmatprep.subr.bf16.mxu0 0
  %123 = vmatpush1.bf16.msra.mxu0 %v114
  %124 = vmatprep.subr.bf16.mxu0 0
  %125 = vmatpush1.bf16.msra.mxu0 %v115
  %126 = vmatprep.subr.bf16.mxu0 0
  %127 = vmatpush1.bf16.msra.mxu0 0
  %128 = vmatprep.subr.bf16.mxu0 0
  %129 = vmatpush1.bf16.msra.mxu0 0
  %130 = vmatprep.subr.bf16.mxu0 0
  %131 = vmatpush1.bf16.msra.mxu0 0
  %132 = vmatprep.subr.bf16.mxu0 0
  %133 = vmatpush1.bf16.msra.mxu0 0
  %134 = vmatprep.subr.bf16.mxu0 0
  %135 = vmatpush1.bf16.msra.mxu0 0
  %136 = vmatprep.subr.bf16.mxu0 0
  %137 = vmatpush1.bf16.msra.mxu0 0
  %138 = vmatprep.subr.bf16.mxu0 0
  %139 = vmatpush1.bf16.msra.mxu0 0
  %140 = vmatprep.subr.bf16.mxu0 0
  %141 = vmatpush1.bf16.msra.mxu0 0
  %142 = vmatprep.subr.bf16.mxu0 0
  %143 = vmatpush1.bf16.msra.mxu0 0
  %144 = vmatprep.subr.bf16.mxu0 0
  %145 = vmatpush1.bf16.msra.mxu0 0
  %146 = vmatprep.subr.bf16.mxu0 0
  %147 = vmatpush1.bf16.msra.mxu0 0
  %148 = vmatprep.subr.bf16.mxu0 0
  %149 = vmatpush1.bf16.msra.mxu0 0
  %150 = vmatprep.subr.bf16.mxu0 0
  %151 = vmatpush1.bf16.msra.mxu0 0
  %152 = vmatprep.subr.bf16.mxu0 0
  %153 = vmatpush1.bf16.msra.mxu0 0
  %154 = vmatprep.mubr.bf16.mxu0 0
  %155 = vmatmul.mubr.bf16.gmra.mrb[0].mxu0 %v120
  %v156 = vpop.f32.mrb[0].mxu0
  %v157 = vadd.f32 %v104, %v156
  %v158 = vpop.f32.mrb[0].mxu0
  %v159 = vpop.f32.mrb[0].mxu0
  %v160 = vpop.f32.mrb[0].mxu0
  %161 = vdwg.mxu0
  %v162 = vmax.f32 %v157, 0.0
  %v163 = vpack.c.bf16 %v162, %v162
  %v164 = vld [vmem:[%s5] sm:$0xf]
  %v165 = vld [vmem:[%s5 + $0x4] sm:$0xf]
  %v166 = vld [vmem:[%s5 + $0x8] sm:$0xf]
  %v167 = vld [vmem:[%s5 + $0xc] sm:$0xf]
  %v168 = vld [vmem:[%s6] sm:$0x1]
  %v170 = vlaneseq
  %v171 = vshrl.u32 %v170, 7
  %v172 = vsub.s32 0, %v171
  %v173 = vrot.slane %v168, %v172
  %v179 = vunpack.c.l.b16 %v164
  %v180 = vunpack.c.l.b16 %v165
  %v181 = vunpack.c.l.b16 %v166
  %v182 = vunpack.c.l.b16 %v167
  %v183 = vpack.c.b16 %v180, %v179
  %v184 = vpack.c.b16 %v182, %v181
  %v188 = vsel %vm118, %v163, 0
  %190 = vmatprep.subr.bf16.mxu0 0
  %191 = vmatpush1.bf16.msra.mxu0 %v183
  %192 = vmatprep.subr.bf16.mxu0 0
  %193 = vmatpush1.bf16.msra.mxu0 %v184
  %194 = vmatprep.subr.bf16.mxu0 0
  %195 = vmatpush1.bf16.msra.mxu0 0
  %196 = vmatprep.subr.bf16.mxu0 0
  %197 = vmatpush1.bf16.msra.mxu0 0
  %198 = vmatprep.subr.bf16.mxu0 0
  %199 = vmatpush1.bf16.msra.mxu0 0
  %200 = vmatprep.subr.bf16.mxu0 0
  %201 = vmatpush1.bf16.msra.mxu0 0
  %202 = vmatprep.subr.bf16.mxu0 0
  %203 = vmatpush1.bf16.msra.mxu0 0
  %204 = vmatprep.subr.bf16.mxu0 0
  %205 = vmatpush1.bf16.msra.mxu0 0
  %206 = vmatprep.subr.bf16.mxu0 0
  %207 = vmatpush1.bf16.msra.mxu0 0
  %208 = vmatprep.subr.bf16.mxu0 0
  %209 = vmatpush1.bf16.msra.mxu0 0
  %210 = vmatprep.subr.bf16.mxu0 0
  %211 = vmatpush1.bf16.msra.mxu0 0
  %212 = vmatprep.subr.bf16.mxu0 0
  %213 = vmatpush1.bf16.msra.mxu0 0
  %214 = vmatprep.subr.bf16.mxu0 0
  %215 = vmatpush1.bf16.msra.mxu0 0
  %216 = vmatprep.subr.bf16.mxu0 0
  %217 = vmatpush1.bf16.msra.mxu0 0
  %218 = vmatprep.subr.bf16.mxu0 0
  %219 = vmatpush1.bf16.msra.mxu0 0
  %220 = vmatprep.subr.bf16.mxu0 0
  %221 = vmatpush1.bf16.msra.mxu0 0
  %222 = vmatprep.mubr.bf16.mxu0 0
  %223 = vmatmul.mubr.bf16.gmra.mrb[0].mxu0 %v188
  %v224 = vpop.f32.mrb[0].mxu0
  %v225 = vadd.f32 %v173, %v224
  %v226 = vpop.f32.mrb[0].mxu0
  %v227 = vpop.f32.mrb[0].mxu0
  %v228 = vpop.f32.mrb[0].mxu0
  %229 = vdwg.mxu0
  %v230 = vld [vmem:[%s7] sm:$0x1]
  %v232 = vlaneseq
  %v233 = vshrl.u32 %v232, 7
  %v234 = vsub.s32 0, %v233
  %v235 = vrot.slane %v230, %v234
  %v237 = vmax.f32 %v225, %v235
  %v238 = vld [vmem:[%s8] sm:$0x1]
  %v240 = vlaneseq
  %v241 = vshrl.u32 %v240, 7
  %v242 = vsub.s32 0, %v241
  %v243 = vrot.slane %v238, %v242
  %v245 = vmin.f32 %v237, %v243
  %v246 = vpack.c.bf16 %v245, %v245
  %247 = vst [vmem:[%s9] sm:$0xf] %v246
  // Predicated region
  $region38: #{policy_forward.1} parent=0 // pred_check
    _
  $region39: #{policy_forward.1} parent=0 // pred_check_branch
    %249 = sbr.rel (0) target = $region41
  $region40: #{policy_forward.1} parent=0 // pred_region
    _
  $region41: #{policy_forward.1} parent=0 // pred_fallthru
    _
  // Predicated region
  $region42: #{policy_forward.1} parent=0 // pred_check
    _
  $region43: #{policy_forward.1} parent=0 // pred_check_branch
    %251 = sbr.rel (0) target = $region45
  $region44: #{policy_forward.1} parent=0 // pred_region
    _
  $region45: #{policy_forward.1} parent=0 // pred_fallthru
    _

</llo_original>
